<compile_context>
chip_gen: v5e
topology: v5e:2x2
jax: 0.10.0
libtpu: 0.0.40
codegen_flags: <defaults>
</compile_context>

<pallas_src>
import functools

import jax
import jax.numpy as jnp
from jax.experimental import pallas as pl
from jax.experimental.pallas import tpu as pltpu


LANE = 128        # feature-dim padding: lane-dense outputs + 128-wide contraction for the MXU
NODE_ALIGN = 16   # node-count padding: bf16 sublane tile is (16, 128)


# ----------------------------- Pallas kernel -----------------------------

def _fused_layer_kernel(src_idx_ref, at_ref, x_ref, dsrc_ref, ddst_ref, w_ref,
                        bsum_ref, out_ref, *, nrel, apply_relu):
    """One HeteroGraphConv layer for one dst-node-type group. grid = (ngrp,).

    All nrel relations of the group run in a statically-unrolled loop, accumulating in f32;
    the (lane-dense) output block is written exactly once at the end.
    """
    g = pl.program_id(0)
    acc = jnp.zeros(out_ref.shape, jnp.float32)
    for j in range(nrel):                                  # nrel is compile-time -> fully unrolled
        si = src_idx_ref[g, j]                             # SMEM scalar: source ntype of relation j
        x = x_ref[si]                                      # (NP, F) f32: dynamic src-ntype select
        xs = (x * dsrc_ref[j]).astype(jnp.bfloat16)        # D_src^{-1/2} row scale (VPU), bf16 MXU op
        m = jnp.dot(at_ref[j], xs,                         # A^T @ X  (bf16 operands, f32 accum)
                    preferred_element_type=jnp.float32)
        m = (m * ddst_ref[j]).astype(jnp.bfloat16)         # D_dst^{-1/2} row scale
        acc = acc + jnp.dot(m, w_ref[j],                   # project: contraction over 128 lanes
                            preferred_element_type=jnp.float32)
    acc = acc + bsum_ref[...]                              # sum_r b_r, added once per group
    if apply_relu:
        acc = jnp.maximum(acc, 0.0)
    out_ref[...] = acc


def fused_hetero_layer(src_idx, at_all, x_all, dsrc_inv, ddst_inv, w_all, b_sum, *, apply_relu):
    """All relations + sum aggregation (+ optional ReLU) of one layer in a single pallas_call."""
    ngrp, nrel, npad, _ = at_all.shape
    nty, npad_x, fpad = x_all.shape
    fout = w_all.shape[-1]
    kernel = functools.partial(_fused_layer_kernel, nrel=nrel, apply_relu=apply_relu)
    return pl.pallas_call(
        kernel,
        out_shape=jax.ShapeDtypeStruct((ngrp, npad, fout), jnp.float32),
        grid_spec=pltpu.PrefetchScalarGridSpec(
            num_scalar_prefetch=1,              # src ntype index per (group, relation) -> SMEM
            grid=(ngrp,),                       # one grid step per dst group; relations in-kernel
            in_specs=[
                pl.BlockSpec((None, nrel, npad, npad), lambda g, si: (g, 0, 0, 0)),  # A^T (bf16)
                pl.BlockSpec((nty, npad_x, fpad), lambda g, si: (0, 0, 0)),          # X, all ntypes
                pl.BlockSpec((None, nrel, npad, 1), lambda g, si: (g, 0, 0, 0)),     # D_src^{-1/2}
                pl.BlockSpec((None, nrel, npad, 1), lambda g, si: (g, 0, 0, 0)),     # D_dst^{-1/2}
                pl.BlockSpec((None, nrel, fpad, fout), lambda g, si: (g, 0, 0, 0)),  # W (bf16)
                pl.BlockSpec((None, 1, fout), lambda g, si: (g, 0, 0)),              # sum_r b_r
            ],
            out_specs=pl.BlockSpec((None, npad, fout), lambda g, si: (g, 0, 0)),     # lane-dense
        ),
        # Dst-group axis is parallel (padded groups carry equal work -> balanced on v7x megacore).
        # TODO(synk): for the tiled large-graph version set vmem_limit_bytes explicitly (v7x: 64 MiB
        # physical, 32 MiB default scoped) and halve v6e-tuned node-dim tiles.
        compiler_params=pltpu.CompilerParams(dimension_semantics=("parallel",)),
    )(src_idx, at_all, x_all, dsrc_inv, ddst_inv, w_all, b_sum)


# ----------------------------- static packing (setup only, plain JAX) -----------------------------

def pack_graph(graph, ntypes, npad):
    """Group relations by dst ntype; pack A^T (bf16, dst-major) and degree-normalization vectors."""
    ntype_idx = {t: i for i, t in enumerate(ntypes)}
    groups = [[] for _ in ntypes]
    for rel, (src, dst, a) in graph.items():
        groups[ntype_idx[dst]].append((rel, src, a))
    nrel = max(1, max(len(grp) for grp in groups))
    ngrp = len(ntypes)

    at_all = jnp.zeros((ngrp, nrel, npad, npad), jnp.bfloat16)
    dsrc_inv = jnp.ones((ngrp, nrel, npad, 1), jnp.float32)   # padded slots: unit scale, zero A
    ddst_inv = jnp.ones((ngrp, nrel, npad, 1), jnp.float32)
    src_idx = jnp.zeros((ngrp, nrel), jnp.int32)
    rel_slots = [[None] * nrel for _ in ntypes]
    for g, grp in enumerate(groups):
        for j, (rel, src, a) in enumerate(grp):
            ns, nd = a.shape
            at_all = at_all.at[g, j, :nd, :ns].set(a.T.astype(jnp.bfloat16))   # stored as A^T
            dout = jnp.maximum(a.sum(axis=1), 1.0) ** -0.5    # src out-degree^{-1/2}
            din = jnp.maximum(a.sum(axis=0), 1.0) ** -0.5     # dst in-degree^{-1/2}
            dsrc_inv = dsrc_inv.at[g, j, :ns, 0].set(dout)
            ddst_inv = ddst_inv.at[g, j, :nd, 0].set(din)
            src_idx = src_idx.at[g, j].set(ntype_idx[src])
            rel_slots[g][j] = rel
    return at_all, src_idx, dsrc_inv, ddst_inv, rel_slots


def pack_layer_params(rel_slots, weights, biases, f_in, f_out, fpad_in, fpad_out):
    ngrp, nrel = len(rel_slots), len(rel_slots[0])
    w_all = jnp.zeros((ngrp, nrel, fpad_in, fpad_out), jnp.bfloat16)   # bf16 MXU operand
    b_sum = jnp.zeros((ngrp, 1, fpad_out), jnp.float32)                # f32 bias, folded per group
    for g in range(ngrp):
        for j, rel in enumerate(rel_slots[g]):
            if rel is None:
                continue                                    # padded relation slot: zero W, no bias
            w_all = w_all.at[g, j, :f_in, :f_out].set(weights[rel].astype(jnp.bfloat16))
            b_sum = b_sum.at[g, 0, :f_out].add(biases[rel])
    return w_all, b_sum


def pack_features(feats, ntypes, npad, fpad):
    f_in = next(iter(feats.values())).shape[-1]
    x_all = jnp.zeros((len(ntypes), npad, fpad), jnp.float32)
    for i, t in enumerate(ntypes):
        n = feats[t].shape[0]
        x_all = x_all.at[i, :n, :f_in].set(feats[t])
    return x_all


# ----------------------------- RGCN forward (2 pallas_calls total) -----------------------------

def rgcn_forward(packed_graph, x_all, packed_params):
    at_all, src_idx, dsrc_inv, ddst_inv = packed_graph
    w1, b1, w2, b2 = packed_params
    h1 = fused_hetero_layer(src_idx, at_all, x_all, dsrc_inv, ddst_inv, w1, b1, apply_relu=True)
    # Layer-1 output is indexed by dst group == ntype index, so it feeds layer 2 directly.
    h2 = fused_hetero_layer(src_idx, at_all, h1, dsrc_inv, ddst_inv, w2, b2, apply_relu=False)
    return h2


# ----------------------------- pure-JAX reference -----------------------------

def _ref_graphconv(a, x, w, b):
    a = a.astype(jnp.float32)
    dout = jnp.maximum(a.sum(1), 1.0)
    din = jnp.maximum(a.sum(0), 1.0)
    xn = x * dout[:, None] ** -0.5
    m = (a.T @ xn) * din[:, None] ** -0.5
    return m @ w + b


def _ref_layer(graph, feats, weights, biases, apply_relu):
    per_dst = {}
    for rel, (src, dst, a) in graph.items():
        if src not in feats:
            continue
        y = _ref_graphconv(a, feats[src], weights[rel], biases[rel])
        per_dst[dst] = per_dst.get(dst, 0.0) + y
    if apply_relu:
        per_dst = {k: jnp.maximum(v, 0.0) for k, v in per_dst.items()}
    return per_dst


def _ref_forward(graph, intra_feats, params):
    h = _ref_layer(graph, intra_feats, params["conv1_w"], params["conv1_b"], True)
    return _ref_layer(graph, h, params["conv2_w"], params["conv2_b"], False)


# ----------------------------- setup / main -----------------------------

def _xavier_uniform(key, shape):
    fan_in, fan_out = shape
    limit = (6.0 / (fan_in + fan_out)) ** 0.5
    return jax.random.uniform(key, shape, jnp.float32, -limit, limit)


if __name__ == "__main__":
    key = jax.random.PRNGKey(0)

    # Module hyper-parameters (small, consistent with the forward pass).
    in_feats, hid_feats, out_feats = 16, 32, 8
    n_drug, n_target = 12, 10
    ntypes = ["drug", "target"]
    n_nodes = {"drug": n_drug, "target": n_target}

    # Canonical relations: rel_name -> (src_ntype, dst_ntype).
    rel_triples = {
        "drug_drug": ("drug", "drug"),
        "drug_target": ("drug", "target"),
        "target_drug": ("target", "drug"),
    }

    # Deterministic synthetic heterograph: dense 0/1 adjacency per relation.
    keys = jax.random.split(key, 16)
    graph = {}
    for i, (rel, (src, dst)) in enumerate(rel_triples.items()):
        a = (jax.random.uniform(keys[i], (n_nodes[src], n_nodes[dst])) < 0.35).astype(jnp.float32)
        graph[rel] = (src, dst, a)

    # Node 'intra' features.
    intra_feats = {
        "drug": jax.random.normal(keys[4], (n_drug, in_feats), jnp.float32),
        "target": jax.random.normal(keys[5], (n_target, in_feats), jnp.float32),
    }

    # Deterministic parameter init (xavier-uniform weights, zero biases), per relation per layer.
    params = {"conv1_w": {}, "conv1_b": {}, "conv2_w": {}, "conv2_b": {}}
    wkeys = jax.random.split(keys[6], 2 * len(rel_triples))
    for i, rel in enumerate(rel_triples):
        params["conv1_w"][rel] = _xavier_uniform(wkeys[2 * i], (in_feats, hid_feats))
        params["conv1_b"][rel] = jnp.zeros((hid_feats,), jnp.float32)
        params["conv2_w"][rel] = _xavier_uniform(wkeys[2 * i + 1], (hid_feats, out_feats))
        params["conv2_b"][rel] = jnp.zeros((out_feats,), jnp.float32)

    # Static packing: node dim padded to a multiple of 16, feature dims padded to 128 (lane-dense).
    npad = ((max(n_nodes.values()) + NODE_ALIGN - 1) // NODE_ALIGN) * NODE_ALIGN
    at_all, src_idx, dsrc_inv, ddst_inv, rel_slots = pack_graph(graph, ntypes, npad)
    x_all = pack_features(intra_feats, ntypes, npad, LANE)
    w1, b1 = pack_layer_params(rel_slots, params["conv1_w"], params["conv1_b"],
                               in_feats, hid_feats, LANE, LANE)
    w2, b2 = pack_layer_params(rel_slots, params["conv2_w"], params["conv2_b"],
                               hid_feats, out_feats, LANE, LANE)

    # Run Pallas RGCN forward.
    h2 = jax.block_until_ready(
        rgcn_forward((at_all, src_idx, dsrc_inv, ddst_inv), x_all, (w1, b1, w2, b2)))
    out = {t: h2[i, :n_nodes[t], :out_feats] for i, t in enumerate(ntypes)}

    # Sanity-check against the plain-JAX f32 reference. Tolerance accounts for bf16 MXU operand
    # quantization (A^T, scaled X, W are bf16; accumulation / bias / ReLU remain f32).
    ref = _ref_forward(graph, intra_feats, params)
    for k in out:
        assert out[k].shape == ref[k].shape
        assert jnp.allclose(out[k], ref[k], atol=5e-2, rtol=5e-2), f"mismatch for ntype {k}"

    print("KERNEL_OK")
</pallas_src>

<mosaic_0001>
module attributes {stable_mosaic.version = 11 : i64} {
  func.func @_fused_layer_kernel(%arg0: i32, %arg1: memref<2x2xi32, #tpu.memory_space<smem>>, %arg2: memref<1x2x16x16xbf16, #tpu.memory_space<vmem>>, %arg3: memref<2x16x128xf32, #tpu.memory_space<vmem>>, %arg4: memref<1x2x16x1xf32, #tpu.memory_space<vmem>>, %arg5: memref<1x2x16x1xf32, #tpu.memory_space<vmem>>, %arg6: memref<1x2x128x128xbf16, #tpu.memory_space<vmem>>, %arg7: memref<1x1x128xf32, #tpu.memory_space<vmem>>, %arg8: memref<1x16x128xf32, #tpu.memory_space<vmem>>) attributes {dimension_semantics = [#tpu.dimension_semantics<parallel>], iteration_bounds = array<i64: 2>, scalar_prefetch = 1 : i64, scratch_operands = 0 : i64, tpu.core_type = #tpu.core_type<tc>, window_params = [{transform_indices = @transform_0, window_bounds = array<i64: 1, 2, 16, 16>}, {pipeline_mode = #tpu.pipeline_mode<synchronous>, transform_indices = @transform_1, window_bounds = array<i64: 2, 16, 128>}, {transform_indices = @transform_2, window_bounds = array<i64: 1, 2, 16, 1>}, {transform_indices = @transform_3, window_bounds = array<i64: 1, 2, 16, 1>}, {transform_indices = @transform_4, window_bounds = array<i64: 1, 2, 128, 128>}, {transform_indices = @transform_5, window_bounds = array<i64: 1, 1, 128>}, {transform_indices = @transform_6, window_bounds = array<i64: 1, 16, 128>}]} {
    %cst = arith.constant 0.000000e+00 : f32
    %0 = vector.broadcast %cst : f32 to vector<16x128xf32>
    %1 = arith.index_cast %arg0 : i32 to index
    %c0 = arith.constant 0 : index
    %2 = memref.load %arg1[%1, %c0] : memref<2x2xi32, #tpu.memory_space<smem>>
    %3 = arith.index_cast %2 : i32 to index
    %c0_0 = arith.constant 0 : index
    %c0_1 = arith.constant 0 : index
    %4 = vector.load %arg3[%3, %c0_0, %c0_1] : memref<2x16x128xf32, #tpu.memory_space<vmem>>, vector<1x16x128xf32>
    %5 = vector.shape_cast %4 : vector<1x16x128xf32> to vector<16x128xf32>
    %c0_2 = arith.constant 0 : index
    %c0_3 = arith.constant 0 : index
    %c0_4 = arith.constant 0 : index
    %c0_5 = arith.constant 0 : index
    %6 = vector.load %arg4[%c0_2, %c0_3, %c0_4, %c0_5] : memref<1x2x16x1xf32, #tpu.memory_space<vmem>>, vector<1x1x16x1xf32>
    %7 = vector.shape_cast %6 : vector<1x1x16x1xf32> to vector<16x1xf32>
    %8 = vector.broadcast %7 : vector<16x1xf32> to vector<16x128xf32>
    %9 = arith.mulf %5, %8 : vector<16x128xf32>
    %10 = arith.truncf %9 : vector<16x128xf32> to vector<16x128xbf16>
    %c0_6 = arith.constant 0 : index
    %c0_7 = arith.constant 0 : index
    %c0_8 = arith.constant 0 : index
    %c0_9 = arith.constant 0 : index
    %11 = vector.load %arg2[%c0_6, %c0_7, %c0_8, %c0_9] : memref<1x2x16x16xbf16, #tpu.memory_space<vmem>>, vector<1x1x16x16xbf16>
    %12 = vector.shape_cast %11 : vector<1x1x16x16xbf16> to vector<16x16xbf16>
    %cst_10 = arith.constant dense<0.000000e+00> : vector<16x128xf32>
    %13 = tpu.matmul %12, %10, %cst_10 {dimension_numbers = #tpu.dot_dimension_numbers<[1], [0], [0], [1], [0, 0, 1, 1], [], []>} : vector<16x16xbf16>, vector<16x128xbf16>, vector<16x128xf32> -> vector<16x128xf32>
    %c0_11 = arith.constant 0 : index
    %c0_12 = arith.constant 0 : index
    %c0_13 = arith.constant 0 : index
    %c0_14 = arith.constant 0 : index
    %14 = vector.load %arg5[%c0_11, %c0_12, %c0_13, %c0_14] : memref<1x2x16x1xf32, #tpu.memory_space<vmem>>, vector<1x1x16x1xf32>
    %15 = vector.shape_cast %14 : vector<1x1x16x1xf32> to vector<16x1xf32>
    %16 = vector.broadcast %15 : vector<16x1xf32> to vector<16x128xf32>
    %17 = arith.mulf %13, %16 : vector<16x128xf32>
    %18 = arith.truncf %17 : vector<16x128xf32> to vector<16x128xbf16>
    %c0_15 = arith.constant 0 : index
    %c0_16 = arith.constant 0 : index
    %c0_17 = arith.constant 0 : index
    %c0_18 = arith.constant 0 : index
    %19 = vector.load %arg6[%c0_15, %c0_16, %c0_17, %c0_18] : memref<1x2x128x128xbf16, #tpu.memory_space<vmem>>, vector<1x1x128x128xbf16>
    %20 = vector.shape_cast %19 : vector<1x1x128x128xbf16> to vector<128x128xbf16>
    %cst_19 = arith.constant dense<0.000000e+00> : vector<16x128xf32>
    %21 = tpu.matmul %18, %20, %cst_19 {dimension_numbers = #tpu.dot_dimension_numbers<[1], [0], [0], [1], [0, 0, 1, 1], [], []>} : vector<16x128xbf16>, vector<128x128xbf16>, vector<16x128xf32> -> vector<16x128xf32>
    %22 = arith.addf %0, %21 : vector<16x128xf32>
    %23 = arith.index_cast %arg0 : i32 to index
    %c1 = arith.constant 1 : index
    %24 = memref.load %arg1[%23, %c1] : memref<2x2xi32, #tpu.memory_space<smem>>
    %25 = arith.index_cast %24 : i32 to index
    %c0_20 = arith.constant 0 : index
    %c0_21 = arith.constant 0 : index
    %26 = vector.load %arg3[%25, %c0_20, %c0_21] : memref<2x16x128xf32, #tpu.memory_space<vmem>>, vector<1x16x128xf32>
    %27 = vector.shape_cast %26 : vector<1x16x128xf32> to vector<16x128xf32>
    %c0_22 = arith.constant 0 : index
    %c1_23 = arith.constant 1 : index
    %c0_24 = arith.constant 0 : index
    %c0_25 = arith.constant 0 : index
    %28 = vector.load %arg4[%c0_22, %c1_23, %c0_24, %c0_25] : memref<1x2x16x1xf32, #tpu.memory_space<vmem>>, vector<1x1x16x1xf32>
    %29 = vector.shape_cast %28 : vector<1x1x16x1xf32> to vector<16x1xf32>
    %30 = vector.broadcast %29 : vector<16x1xf32> to vector<16x128xf32>
    %31 = arith.mulf %27, %30 : vector<16x128xf32>
    %32 = arith.truncf %31 : vector<16x128xf32> to vector<16x128xbf16>
    %c0_26 = arith.constant 0 : index
    %c1_27 = arith.constant 1 : index
    %c0_28 = arith.constant 0 : index
    %c0_29 = arith.constant 0 : index
    %33 = vector.load %arg2[%c0_26, %c1_27, %c0_28, %c0_29] : memref<1x2x16x16xbf16, #tpu.memory_space<vmem>>, vector<1x1x16x16xbf16>
    %34 = vector.shape_cast %33 : vector<1x1x16x16xbf16> to vector<16x16xbf16>
    %cst_30 = arith.constant dense<0.000000e+00> : vector<16x128xf32>
    %35 = tpu.matmul %34, %32, %cst_30 {dimension_numbers = #tpu.dot_dimension_numbers<[1], [0], [0], [1], [0, 0, 1, 1], [], []>} : vector<16x16xbf16>, vector<16x128xbf16>, vector<16x128xf32> -> vector<16x128xf32>
    %c0_31 = arith.constant 0 : index
    %c1_32 = arith.constant 1 : index
    %c0_33 = arith.constant 0 : index
    %c0_34 = arith.constant 0 : index
    %36 = vector.load %arg5[%c0_31, %c1_32, %c0_33, %c0_34] : memref<1x2x16x1xf32, #tpu.memory_space<vmem>>, vector<1x1x16x1xf32>
    %37 = vector.shape_cast %36 : vector<1x1x16x1xf32> to vector<16x1xf32>
    %38 = vector.broadcast %37 : vector<16x1xf32> to vector<16x128xf32>
    %39 = arith.mulf %35, %38 : vector<16x128xf32>
    %40 = arith.truncf %39 : vector<16x128xf32> to vector<16x128xbf16>
    %c0_35 = arith.constant 0 : index
    %c1_36 = arith.constant 1 : index
    %c0_37 = arith.constant 0 : index
    %c0_38 = arith.constant 0 : index
    %41 = vector.load %arg6[%c0_35, %c1_36, %c0_37, %c0_38] : memref<1x2x128x128xbf16, #tpu.memory_space<vmem>>, vector<1x1x128x128xbf16>
    %42 = vector.shape_cast %41 : vector<1x1x128x128xbf16> to vector<128x128xbf16>
    %cst_39 = arith.constant dense<0.000000e+00> : vector<16x128xf32>
    %43 = tpu.matmul %40, %42, %cst_39 {dimension_numbers = #tpu.dot_dimension_numbers<[1], [0], [0], [1], [0, 0, 1, 1], [], []>} : vector<16x128xbf16>, vector<128x128xbf16>, vector<16x128xf32> -> vector<16x128xf32>
    %44 = arith.addf %22, %43 : vector<16x128xf32>
    %c0_40 = arith.constant 0 : index
    %c0_41 = arith.constant 0 : index
    %c0_42 = arith.constant 0 : index
    %45 = vector.load %arg7[%c0_40, %c0_41, %c0_42] : memref<1x1x128xf32, #tpu.memory_space<vmem>>, vector<1x1x128xf32>
    %46 = vector.shape_cast %45 : vector<1x1x128xf32> to vector<1x128xf32>
    %47 = vector.broadcast %46 : vector<1x128xf32> to vector<16x128xf32>
    %48 = arith.addf %44, %47 : vector<16x128xf32>
    %cst_43 = arith.constant 0.000000e+00 : f32
    %49 = vector.broadcast %cst_43 : f32 to vector<16x128xf32>
    %50 = arith.maximumf %48, %49 : vector<16x128xf32>
    %c0_44 = arith.constant 0 : index
    %c0_45 = arith.constant 0 : index
    %c0_46 = arith.constant 0 : index
    %51 = vector.load %arg8[%c0_44, %c0_45, %c0_46] : memref<1x16x128xf32, #tpu.memory_space<vmem>>, vector<1x16x128xf32>
    %52 = vector.shape_cast %51 : vector<1x16x128xf32> to vector<16x128xf32>
    %53 = vector.shape_cast %50 : vector<16x128xf32> to vector<1x16x128xf32>
    tpu.vector_store %arg8[%c0_44, %c0_45, %c0_46], %53 {strides = array<i32>} : memref<1x16x128xf32, #tpu.memory_space<vmem>>, vector<1x16x128xf32>,
    return
  }
  func.func @transform_0(%arg0: i32, %arg1: memref<2x2xi32, #tpu.memory_space<smem>>) -> (i32, i32, i32, i32) {
    %c0_i32 = arith.constant 0 : i32
    %c0_i32_0 = arith.constant 0 : i32
    %c0_i32_1 = arith.constant 0 : i32
    %c0_i32_2 = arith.constant 0 : i32
    return %arg0, %c0_i32, %c0_i32_0, %c0_i32_1 : i32, i32, i32, i32
  }
  func.func @transform_1(%arg0: i32, %arg1: memref<2x2xi32, #tpu.memory_space<smem>>) -> (i32, i32, i32) {
    %c0_i32 = arith.constant 0 : i32
    %c0_i32_0 = arith.constant 0 : i32
    %c0_i32_1 = arith.constant 0 : i32
    %c0_i32_2 = arith.constant 0 : i32
    return %c0_i32, %c0_i32_0, %c0_i32_1 : i32, i32, i32
  }
  func.func @transform_2(%arg0: i32, %arg1: memref<2x2xi32, #tpu.memory_space<smem>>) -> (i32, i32, i32, i32) {
    %c0_i32 = arith.constant 0 : i32
    %c0_i32_0 = arith.constant 0 : i32
    %c0_i32_1 = arith.constant 0 : i32
    %c0_i32_2 = arith.constant 0 : i32
    return %arg0, %c0_i32, %c0_i32_0, %c0_i32_1 : i32, i32, i32, i32
  }
  func.func @transform_3(%arg0: i32, %arg1: memref<2x2xi32, #tpu.memory_space<smem>>) -> (i32, i32, i32, i32) {
    %c0_i32 = arith.constant 0 : i32
    %c0_i32_0 = arith.constant 0 : i32
    %c0_i32_1 = arith.constant 0 : i32
    %c0_i32_2 = arith.constant 0 : i32
    return %arg0, %c0_i32, %c0_i32_0, %c0_i32_1 : i32, i32, i32, i32
  }
  func.func @transform_4(%arg0: i32, %arg1: memref<2x2xi32, #tpu.memory_space<smem>>) -> (i32, i32, i32, i32) {
    %c0_i32 = arith.constant 0 : i32
    %c0_i32_0 = arith.constant 0 : i32
    %c0_i32_1 = arith.constant 0 : i32
    %c0_i32_2 = arith.constant 0 : i32
    return %arg0, %c0_i32, %c0_i32_0, %c0_i32_1 : i32, i32, i32, i32
  }
  func.func @transform_5(%arg0: i32, %arg1: memref<2x2xi32, #tpu.memory_space<smem>>) -> (i32, i32, i32) {
    %c0_i32 = arith.constant 0 : i32
    %c0_i32_0 = arith.constant 0 : i32
    %c0_i32_1 = arith.constant 0 : i32
    return %arg0, %c0_i32, %c0_i32_0 : i32, i32, i32
  }
  func.func @transform_6(%arg0: i32, %arg1: memref<2x2xi32, #tpu.memory_space<smem>>) -> (i32, i32, i32) {
    %c0_i32 = arith.constant 0 : i32
    %c0_i32_0 = arith.constant 0 : i32
    %c0_i32_1 = arith.constant 0 : i32
    return %arg0, %c0_i32, %c0_i32_0 : i32, i32, i32
  }
}

</mosaic_0001>

<llo_original>
// kernel: tpu_custom_call.1
$region0: #{tpu_custom_call.1}
  #allocation0 [shape = 'u32[]', space=smem, size = 0x4, offset = 0x4, fixed_abs, tag = 'smem constant byte address 0x4 - core index']
  #allocation1 [shape = 'u32[72,128]{1,0:T(1,128)}', space=vmem, size = 0x9000, scoped, tag = 'internal scratch']
  #allocation2 [shape = 's32[1]{0}', space=sflag, size = 0x4, scoped, tag = 'scoped memory for tpu_custom_call.1']
  #allocation3 [shape = 'u8[1024]{0}', space=smem, size = 0x400, scoped, tag = 'prefetched SMEM operand 0']
  %s0 = inlined_call_operand.vmem [shape: s32[2,2], index: 0, kind: input, shape index: {}]
  %s1 = inlined_call_operand.vmem [shape: bf16[2,2,16,16], index: 1, kind: input, shape index: {}]
  %s2 = inlined_call_operand.vmem [shape: f32[2,16,128], index: 2, kind: input, shape index: {}]
  %s3 = inlined_call_operand.vmem [shape: f32[2,2,16,1], index: 3, kind: input, shape index: {}]
  %s4 = inlined_call_operand.vmem [shape: f32[2,2,16,1], index: 4, kind: input, shape index: {}]
  %s5 = inlined_call_operand.hbm [shape: bf16[2,2,128,128], index: 5, kind: input, shape index: {}]
  %s6 = inlined_call_operand.vmem [shape: f32[2,1,128], index: 6, kind: input, shape index: {}]
  %s7 = inlined_call_operand.hbm [shape: f32[2,16,128], index: 7, kind: output, shape index: {}]
  %s8 = sld [smem:[#allocation0]]
  $region61: #{tpu_custom_call.1} parent=0
    _
  %s10 = ssub.s32 1, %s8
  %s11 = scalar_select 0, %s10, %s8
  %s13 = sshll.u32 %s0, 4
  %s14 = int_to_ptr.vmem [resolvable:$true] %s13
  %16 = dma.vmem_to_smem %s14, 32, [#allocation3], [#allocation2]
  %18 = dma.done [#allocation2], 32
  %19 = sfence
  $region1: #{tpu_custom_call.1} parent=0
    #allocation4 [shape = 'u8[131072]{0}', space=vmem, size = 0x20000, scoped, tag = 'input window, operand 5']
    #allocation5 [shape = 's32[2]{0}', space=sflag, size = 0x8, scoped, tag = 'scoped memory for tpu_custom_call.1']
    #allocation6 [shape = 's32[2]{0}', space=sflag, size = 0x8, scoped, tag = 'scoped memory for tpu_custom_call.1']
    #allocation7 [shape = 'u8[16384]{0}', space=vmem, size = 0x4000, scoped, tag = 'output window, operand 0']
    %20 = vsyncpa [#allocation5], 0
    %s21 = scalar_lea.sflag [#allocation5], 1
    %22 = vsyncpa %s21, 0
    %23 = vsyncpa [#allocation6], 0
    %s24 = scalar_lea.sflag [#allocation6], 1
    %25 = vsyncpa %s24, 0
    loop: start=0, step=1, limit=4
    $region2: #{tpu_custom_call.1} parent=1 // loop_pre_header
      _
    $region3: #{tpu_custom_call.1} parent=1 // loop_header
      %s27 = sphi 0, %s31
      %p28 = scmp.ge.s32.totalorder %s27, 4
      %s37 = sphi 0, %s39
      %s40 = sphi 0, %s37
      %s41 = sphi 0, %s40
      %s57 = sphi 0, %s41
      %s61 = sphi 0, %s61
      %s63 = sphi 0, %s61
      %s64 = sphi 0, %s63
      %s78 = sphi 0, %s64
      %s84 = sphi 0, %s86
      %s87 = sphi 0, %s84
      %s88 = sphi 0, %s87
      %s104 = sphi 0, %s88
      %s110 = sphi 0, %s112
      %s113 = sphi 0, %s110
      %s114 = sphi 0, %s113
      %s130 = sphi 0, %s114
      %s136 = sphi 0, %s138
      %s139 = sphi 0, %s136
      %s140 = sphi 0, %s139
      %s156 = sphi 0, %s140
      %s162 = sphi 0, %s164
      %s165 = sphi 0, %s162
      %s166 = sphi 0, %s165
      %s182 = sphi 0, %s166
      %s188 = sphi 0, %s190
      %s191 = sphi 0, %s188
      %s192 = sphi 0, %s191
      %s208 = sphi 0, %s192
    $region4: #{tpu_custom_call.1} parent=1 // loop_header_branch
      %30 = sbr.rel (%p28) target = $region8
    $region5: #{tpu_custom_call.1} parent=1 // loop_body
      %s32 = ssub.s32 %s27, 1
      %s33 = ssub.s32 %s27, 2
      %s34 = sadd.s32 %s27, 1
      %s35 = ssub.s32 %s27, %s34
      %p36 = scmp.eq.s32.totalorder %s35, 0
      %s38 = sadd.s32 %s37, 1
      %s39 = scalar_select %p36, %s37, %s38
      %p42 = pneg %p36
      %p43 = scmp.eq.s32.totalorder %s27, 1
      %p44 = por %p42, %p43
      %p45 = scmp.ne.s32.totalorder %s37, %s40
      %p46 = scmp.eq.s32.totalorder %s27, 0
      %p47 = por %p45, %p46
      %p48 = scmp.ne.s32.totalorder %s37, %s40
      %p49 = scmp.eq.s32.totalorder %s32, 1
      %p50 = por %p48, %p49
      %p51 = scmp.ne.s32.totalorder %s40, %s41
      %p52 = scmp.eq.s32.totalorder %s32, 0
      %p53 = por %p51, %p52
      %p54 = scmp.ne.s32.totalorder %s40, %s41
      %p55 = scmp.eq.s32.totalorder %s33, 1
      %p56 = por %p54, %p55
      %p58 = scmp.ne.s32.totalorder %s41, %s57
      %p59 = scmp.eq.s32.totalorder %s33, 0
      %p60 = por %p58, %p59
      %s62 = sadd.s32 %s61, 1
      %p65 = scmp.eq.s32.totalorder %s27, 1
      %p66 = scmp.ne.s32.totalorder %s61, %s63
      %p67 = scmp.eq.s32.totalorder %s27, 0
      %p68 = por %p66, %p67
      %p69 = scmp.ne.s32.totalorder %s61, %s63
      %p70 = scmp.eq.s32.totalorder %s32, 1
      %p71 = por %p69, %p70
      %p72 = scmp.ne.s32.totalorder %s63, %s64
      %p73 = scmp.eq.s32.totalorder %s32, 0
      %p74 = por %p72, %p73
      %p75 = scmp.ne.s32.totalorder %s63, %s64
      %p76 = scmp.eq.s32.totalorder %s33, 1
      %p77 = por %p75, %p76
      %p79 = scmp.ne.s32.totalorder %s64, %s78
      %p80 = scmp.eq.s32.totalorder %s33, 0
      %p81 = por %p79, %p80
      %s82 = ssub.s32 %s27, %s34
      %p83 = scmp.eq.s32.totalorder %s82, 0
      %s85 = sadd.s32 %s84, 1
      %s86 = scalar_select %p83, %s84, %s85
      %p89 = pneg %p83
      %p90 = scmp.eq.s32.totalorder %s27, 1
      %p91 = por %p89, %p90
      %p92 = scmp.ne.s32.totalorder %s84, %s87
      %p93 = scmp.eq.s32.totalorder %s27, 0
      %p94 = por %p92, %p93
      %p95 = scmp.ne.s32.totalorder %s84, %s87
      %p96 = scmp.eq.s32.totalorder %s32, 1
      %p97 = por %p95, %p96
      %p98 = scmp.ne.s32.totalorder %s87, %s88
      %p99 = scmp.eq.s32.totalorder %s32, 0
      %p100 = por %p98, %p99
      %p101 = scmp.ne.s32.totalorder %s87, %s88
      %p102 = scmp.eq.s32.totalorder %s33, 1
      %p103 = por %p101, %p102
      %p105 = scmp.ne.s32.totalorder %s88, %s104
      %p106 = scmp.eq.s32.totalorder %s33, 0
      %p107 = por %p105, %p106
      %s108 = ssub.s32 %s27, %s34
      %p109 = scmp.eq.s32.totalorder %s108, 0
      %s111 = sadd.s32 %s110, 1
      %s112 = scalar_select %p109, %s110, %s111
      %p115 = pneg %p109
      %p116 = scmp.eq.s32.totalorder %s27, 1
      %p117 = por %p115, %p116
      %p118 = scmp.ne.s32.totalorder %s110, %s113
      %p119 = scmp.eq.s32.totalorder %s27, 0
      %p120 = por %p118, %p119
      %p121 = scmp.ne.s32.totalorder %s110, %s113
      %p122 = scmp.eq.s32.totalorder %s32, 1
      %p123 = por %p121, %p122
      %p124 = scmp.ne.s32.totalorder %s113, %s114
      %p125 = scmp.eq.s32.totalorder %s32, 0
      %p126 = por %p124, %p125
      %p127 = scmp.ne.s32.totalorder %s113, %s114
      %p128 = scmp.eq.s32.totalorder %s33, 1
      %p129 = por %p127, %p128
      %p131 = scmp.ne.s32.totalorder %s114, %s130
      %p132 = scmp.eq.s32.totalorder %s33, 0
      %p133 = por %p131, %p132
      %s134 = ssub.s32 %s27, %s34
      %p135 = scmp.eq.s32.totalorder %s134, 0
      %s137 = sadd.s32 %s136, 1
      %s138 = scalar_select %p135, %s136, %s137
      %p141 = pneg %p135
      %p142 = scmp.eq.s32.totalorder %s27, 1
      %p143 = por %p141, %p142
      %p144 = scmp.ne.s32.totalorder %s136, %s139
      %p145 = scmp.eq.s32.totalorder %s27, 0
      %p146 = por %p144, %p145
      %p147 = scmp.ne.s32.totalorder %s136, %s139
      %p148 = scmp.eq.s32.totalorder %s32, 1
      %p149 = por %p147, %p148
      %p150 = scmp.ne.s32.totalorder %s139, %s140
      %p151 = scmp.eq.s32.totalorder %s32, 0
      %p152 = por %p150, %p151
      %p153 = scmp.ne.s32.totalorder %s139, %s140
      %p154 = scmp.eq.s32.totalorder %s33, 1
      %p155 = por %p153, %p154
      %p157 = scmp.ne.s32.totalorder %s140, %s156
      %p158 = scmp.eq.s32.totalorder %s33, 0
      %p159 = por %p157, %p158
      %s160 = ssub.s32 %s27, %s34
      %p161 = scmp.eq.s32.totalorder %s160, 0
      %s163 = sadd.s32 %s162, 1
      %s164 = scalar_select %p161, %s162, %s163
      %p167 = pneg %p161
      %p168 = scmp.eq.s32.totalorder %s27, 1
      %p169 = por %p167, %p168
      %p170 = scmp.ne.s32.totalorder %s162, %s165
      %p171 = scmp.eq.s32.totalorder %s27, 0
      %p172 = por %p170, %p171
      %p173 = scmp.ne.s32.totalorder %s162, %s165
      %p174 = scmp.eq.s32.totalorder %s32, 1
      %p175 = por %p173, %p174
      %p176 = scmp.ne.s32.totalorder %s165, %s166
      %p177 = scmp.eq.s32.totalorder %s32, 0
      %p178 = por %p176, %p177
      %p179 = scmp.ne.s32.totalorder %s165, %s166
      %p180 = scmp.eq.s32.totalorder %s33, 1
      %p181 = por %p179, %p180
      %p183 = scmp.ne.s32.totalorder %s166, %s182
      %p184 = scmp.eq.s32.totalorder %s33, 0
      %p185 = por %p183, %p184
      %s186 = ssub.s32 %s27, %s34
      %p187 = scmp.eq.s32.totalorder %s186, 0
      %s189 = sadd.s32 %s188, 1
      %s190 = scalar_select %p187, %s188, %s189
      %p193 = pneg %p187
      %p194 = scmp.eq.s32.totalorder %s27, 1
      %p195 = por %p193, %p194
      %p196 = scmp.ne.s32.totalorder %s188, %s191
      %p197 = scmp.eq.s32.totalorder %s27, 0
      %p198 = por %p196, %p197
      %p199 = scmp.ne.s32.totalorder %s188, %s191
      %p200 = scmp.eq.s32.totalorder %s32, 1
      %p201 = por %p199, %p200
      %p202 = scmp.ne.s32.totalorder %s191, %s192
      %p203 = scmp.eq.s32.totalorder %s32, 0
      %p204 = por %p202, %p203
      %p205 = scmp.ne.s32.totalorder %s191, %s192
      %p206 = scmp.eq.s32.totalorder %s33, 1
      %p207 = por %p205, %p206
      %p209 = scmp.ne.s32.totalorder %s192, %s208
      %p210 = scmp.eq.s32.totalorder %s33, 0
      %p211 = por %p209, %p210
      %p212 = scmp.le.s32.totalorder 1, %s27
      %p213 = scmp.lt.s32.totalorder %s27, 3
      %p214 = pnand %p212, %p213
      %p215 = pneg %p214
      // Predicated region
      $region9: #{tpu_custom_call.1} parent=5 // pred_check
        _
      $region10: #{tpu_custom_call.1} parent=5 // pred_check_branch
        %217 = sbr.rel (%p214) target = $region12
      $region11: #{tpu_custom_call.1} parent=5 // pred_region
        %s218 = ssub.s32 %s27, 1
        // Predicated region
        $region13: #{tpu_custom_call.1} parent=11 // pred_check
          %p219 = pneg %p74
        $region14: #{tpu_custom_call.1} parent=11 // pred_check_branch
          %221 = sbr.rel (%p219) target = $region16
        $region15: #{tpu_custom_call.1} parent=11 // pred_region
          _
        $region16: #{tpu_custom_call.1} parent=11 // pred_fallthru
          _
      $region12: #{tpu_custom_call.1} parent=5 // pred_fallthru
        _
      %p222 = scmp.lt.s32.totalorder %s27, 2
      // Predicated region
      $region17: #{tpu_custom_call.1} parent=5 // pred_check
        %p223 = pneg %p222
      $region18: #{tpu_custom_call.1} parent=5 // pred_check_branch
        %225 = sbr.rel (%p223) target = $region20
      $region19: #{tpu_custom_call.1} parent=5 // pred_region
        // Predicated region
        $region21: #{tpu_custom_call.1} parent=19 // pred_check
          %p226 = pneg %p47
        $region22: #{tpu_custom_call.1} parent=19 // pred_check_branch
          %228 = sbr.rel (%p226) target = $region24
        $region23: #{tpu_custom_call.1} parent=19 // pred_region
          %p229 = scmp.lt.s32.totalorder %s27, 1
          %s230 = scalar_select %p229, %s27, 1
          %s231 = smul.addr %s230, 4
          %s232 = smul.addr %s231, 4
          %s233 = scalar_lea.vmem %s1, %s232
        $region24: #{tpu_custom_call.1} parent=19 // pred_fallthru
          _
        // Predicated region
        $region25: #{tpu_custom_call.1} parent=19 // pred_check
          %p234 = pneg %p94
        $region26: #{tpu_custom_call.1} parent=19 // pred_check_branch
          %236 = sbr.rel (%p234) target = $region28
        $region27: #{tpu_custom_call.1} parent=19 // pred_region
          %p237 = scmp.lt.s32.totalorder %s27, 1
          %s238 = scalar_select %p237, %s27, 1
          %s239 = smul.addr %s238, 4
          %s240 = smul.addr %s239, 8
          %s241 = scalar_lea.vmem %s3, %s240
        $region28: #{tpu_custom_call.1} parent=19 // pred_fallthru
          _
        // Predicated region
        $region29: #{tpu_custom_call.1} parent=19 // pred_check
          %p242 = pneg %p120
        $region30: #{tpu_custom_call.1} parent=19 // pred_check_branch
          %244 = sbr.rel (%p242) target = $region32
        $region31: #{tpu_custom_call.1} parent=19 // pred_region
          %p245 = scmp.lt.s32.totalorder %s27, 1
          %s246 = scalar_select %p245, %s27, 1
          %s247 = smul.addr %s246, 4
          %s248 = smul.addr %s247, 8
          %s249 = scalar_lea.vmem %s4, %s248
        $region32: #{tpu_custom_call.1} parent=19 // pred_fallthru
          _
        // Predicated region
        $region33: #{tpu_custom_call.1} parent=19 // pred_check
          %p250 = pneg %p146
        $region34: #{tpu_custom_call.1} parent=19 // pred_check_branch
          %252 = sbr.rel (%p250) target = $region36
        $region35: #{tpu_custom_call.1} parent=19 // pred_region
          %s253 = sand.u32 %s136, 1
          %s254 = scalar_lea.sflag [#allocation5], %s253
          %s255 = sand.u32 %s136, 1
          %s256 = smul.addr %s255, 128
          %s257 = scalar_lea.vmem [#allocation4], %s256
          %259 = vsyncadd %s254, 0
          %s260 = smul.addr %s27, 32
          %s261 = smul.addr %s260, 4
          %s262 = scalar_lea.hbm %s5, %s261
          %s263 = sshll.u32 %s262, 4
          %s264 = int_to_ptr.hbm [resolvable:$true] %s263
          %s265 = sshll.u32 %s257, 4
          %s266 = int_to_ptr.vmem [resolvable:$true] %s265
          %271 = dma.hbm_to_vmem [thread:$0]  %s264, 2048, %s266, %s254, 64, 64, 4
        $region36: #{tpu_custom_call.1} parent=19 // pred_fallthru
          _
        // Predicated region
        $region37: #{tpu_custom_call.1} parent=19 // pred_check
          %p272 = pneg %p172
        $region38: #{tpu_custom_call.1} parent=19 // pred_check_branch
          %274 = sbr.rel (%p272) target = $region40
        $region39: #{tpu_custom_call.1} parent=19 // pred_region
          %p275 = scmp.lt.s32.totalorder %s27, 1
          %s276 = scalar_select %p275, %s27, 1
          %s277 = scalar_lea.vmem %s6, %s276
        $region40: #{tpu_custom_call.1} parent=19 // pred_fallthru
          _
      $region20: #{tpu_custom_call.1} parent=5 // pred_fallthru
        _
      %p278 = scmp.le.s32.totalorder 1, %s27
      %p279 = scmp.lt.s32.totalorder %s27, 3
      %p280 = pnand %p278, %p279
      %p281 = pneg %p280
      // Predicated region
      $region41: #{tpu_custom_call.1} parent=5 // pred_check
        _
      $region42: #{tpu_custom_call.1} parent=5 // pred_check_branch
        %283 = sbr.rel (%p280) target = $region44
      $region43: #{tpu_custom_call.1} parent=5 // pred_region
        %s284 = ssub.s32 %s27, 1
        %s285 = sand.u32 %s139, 1
        %s286 = scalar_lea.sflag [#allocation5], %s285
        %s287 = sand.u32 %s139, 1
        %s288 = smul.addr %s287, 128
        %s289 = scalar_lea.vmem [#allocation4], %s288
        // Predicated region
        $region45: #{tpu_custom_call.1} parent=43 // pred_check
          %p290 = pneg %p152
        $region46: #{tpu_custom_call.1} parent=43 // pred_check_branch
          %292 = sbr.rel (%p290) target = $region48
        $region47: #{tpu_custom_call.1} parent=43 // pred_region
          %294 = dma.done %s286, 2048
        $region48: #{tpu_custom_call.1} parent=43 // pred_fallthru
          _
        %p295 = scmp.lt.s32.totalorder %s32, 1
        %s296 = scalar_select %p295, %s32, 1
        %s297 = smul.addr %s296, 4
        %s298 = smul.addr %s297, 4
        %s299 = scalar_lea.vmem %s1, %s298
        %p300 = pneg %p53
        %p301 = pneg %p50
        %p302 = pneg %p74
        %p303 = pneg %p71
        %p304 = scmp.lt.s32.totalorder %s32, 1
        %s305 = scalar_select %p304, %s32, 1
        %s306 = smul.addr %s305, 4
        %s307 = smul.addr %s306, 8
        %s308 = scalar_lea.vmem %s3, %s307
        %p309 = pneg %p100
        %p310 = pneg %p97
        %p311 = scmp.lt.s32.totalorder %s32, 1
        %s312 = scalar_select %p311, %s32, 1
        %s313 = smul.addr %s312, 4
        %s314 = smul.addr %s313, 8
        %s315 = scalar_lea.vmem %s4, %s314
        %p316 = pneg %p126
        %p317 = pneg %p123
        %s318 = sand.u32 %s139, 1
        %s319 = scalar_lea.sflag [#allocation5], %s318
        %s320 = sand.u32 %s139, 1
        %s321 = smul.addr %s320, 128
        %s322 = scalar_lea.vmem [#allocation4], %s321
        %p323 = pneg %p152
        %p324 = pneg %p149
        %p325 = scmp.lt.s32.totalorder %s32, 1
        %s326 = scalar_select %p325, %s32, 1
        %s327 = scalar_lea.vmem %s6, %s326
        %p328 = pneg %p178
        %p329 = pneg %p175
        %p330 = pneg %p204
        %p331 = pneg %p201
        %s332 = sand.u32 %s191, 1
        %s333 = scalar_lea.sflag [#allocation6], %s332
        %s334 = sand.u32 %s191, 1
        %s335 = smul.addr %s334, 16
        %s336 = scalar_lea.vmem [#allocation7], %s335
        %p337 = scmp.lt.s32.totalorder %s32, 1
        %s338 = scalar_select %p337, %s32, 1
        %s339 = smul.addr %s338, 4
        %s340 = smul.addr %s339, 4
        %s341 = scalar_lea.vmem %s1, %s340
        %p342 = scmp.lt.s32.totalorder %s32, 1
        %s343 = scalar_select %p342, %s32, 1
        %s344 = smul.addr %s343, 4
        %s345 = smul.addr %s344, 8
        %s346 = scalar_lea.vmem %s3, %s345
        %p347 = scmp.lt.s32.totalorder %s32, 1
        %s348 = scalar_select %p347, %s32, 1
        %s349 = smul.addr %s348, 4
        %s350 = smul.addr %s349, 8
        %s351 = scalar_lea.vmem %s4, %s350
        %p352 = scmp.lt.s32.totalorder %s32, 1
        %s353 = scalar_select %p352, %s32, 1
        %s354 = scalar_lea.vmem %s6, %s353
        %s356 = smul.u32 %s32, 128
        %s357 = sld [smem:[#allocation3 + %s356]]
        %s358 = smul.u32 %s357, 16
        %s359 = scalar_lea.vmem %s2, %s358
        %v360 = vld [vmem:[%s359] sm:$0xff]
        %v361 = vld [vmem:[%s359 + $0x8] sm:$0xff]
        %v362 = vld [vmem:[%s346] sm:$0xff]
        %v363 = vld [vmem:[%s346 + $0x8] sm:$0xff]
        %365 = vset.pattern.permute.xlu0 0
        %366 = vperm.xlu0 %365, %v362
        %v367 = vpop.permute.xlu0 %366
        %370 = vset.pattern.permute.xlu0 0
        %371 = vperm.xlu0 %370, %v363
        %v372 = vpop.permute.xlu0 %371
        %v374 = vmul.f32 %v360, %v367
        %v375 = vmul.f32 %v361, %v372
        %v376 = vpack.c.bf16 %v375, %v374
        %v377 = vld [vmem:[%s341] sm:$0xf]
        %v378 = vld [vmem:[%s341 + $0x4] sm:$0xf]
        %v381 = vunpack.c.l.b16 %v377
        %v382 = vunpack.c.l.b16 %v378
        %v383 = vpack.c.b16 %v382, %v381
        %vm384 = vcmask 130048
        %v386 = vsel %vm384, %v383, 0
        %388 = vmatpush.bf16.msra.mxu0 0
        %389 = vmatpush.bf16.msra.mxu0 0
        %390 = vmatpush.bf16.msra.mxu0 0
        %391 = vmatpush.bf16.msra.mxu0 0
        %392 = vmatpush.bf16.msra.mxu0 0
        %393 = vmatpush.bf16.msra.mxu0 0
        %394 = vmatpush.bf16.msra.mxu0 0
        %395 = vmatpush.bf16.msra.mxu0 %v376
        %396 = vmatmul.bf16.gmra.mxu0 %v386
        %v397 = vpop.f32.mrf.mxu0
        %v398 = vadd.f32 0.0, %v397
        %v399 = vpop.f32.mrf.mxu0
        %v400 = vadd.f32 0.0, %v399
        %401 = vdwg.mxu0
        %v402 = vld [vmem:[%s351] sm:$0xff]
        %v403 = vld [vmem:[%s351 + $0x8] sm:$0xff]
        %405 = vset.pattern.permute.xlu0 0
        %406 = vperm.xlu0 %405, %v402
        %v407 = vpop.permute.xlu0 %406
        %410 = vset.pattern.permute.xlu0 0
        %411 = vperm.xlu0 %410, %v403
        %v412 = vpop.permute.xlu0 %411
        %v414 = vmul.f32 %v398, %v407
        %v415 = vmul.f32 %v400, %v412
        %v416 = vpack.c.bf16 %v415, %v414
        %v417 = vld [vmem:[%s289] sm:$0xf]
        %v418 = vld [vmem:[%s289 + $0x4] sm:$0xf]
        %v419 = vld [vmem:[%s289 + $0x8] sm:$0xf]
        %v420 = vld [vmem:[%s289 + $0xc] sm:$0xf]
        %v421 = vld [vmem:[%s289 + $0x10] sm:$0xf]
        %v422 = vld [vmem:[%s289 + $0x14] sm:$0xf]
        %v423 = vld [vmem:[%s289 + $0x18] sm:$0xf]
        %v424 = vld [vmem:[%s289 + $0x1c] sm:$0xf]
        %v425 = vld [vmem:[%s289 + $0x20] sm:$0xf]
        %v426 = vld [vmem:[%s289 + $0x24] sm:$0xf]
        %v427 = vld [vmem:[%s289 + $0x28] sm:$0xf]
        %v428 = vld [vmem:[%s289 + $0x2c] sm:$0xf]
        %v429 = vld [vmem:[%s289 + $0x30] sm:$0xf]
        %v430 = vld [vmem:[%s289 + $0x34] sm:$0xf]
        %v431 = vld [vmem:[%s289 + $0x38] sm:$0xf]
        %v432 = vld [vmem:[%s289 + $0x3c] sm:$0xf]
        %s433 = sadd.s32 %s356, 1
        %s434 = sld [smem:[#allocation3 + %s433]]
        %s435 = smul.u32 %s434, 16
        %s436 = scalar_lea.vmem %s2, %s435
        %v437 = vld [vmem:[%s436] sm:$0xff]
        %v438 = vld [vmem:[%s436 + $0x8] sm:$0xff]
        %s439 = scalar_lea.vmem %s346, 16
        %v440 = vld [vmem:[%s439] sm:$0xff]
        %v441 = vld [vmem:[%s439 + $0x8] sm:$0xff]
        %443 = vset.pattern.permute.xlu0 0
        %444 = vperm.xlu0 %443, %v440
        %v445 = vpop.permute.xlu0 %444
        %448 = vset.pattern.permute.xlu0 0
        %449 = vperm.xlu0 %448, %v441
        %v450 = vpop.permute.xlu0 %449
        %v452 = vmul.f32 %v437, %v445
        %v453 = vmul.f32 %v438, %v450
        %v454 = vpack.c.bf16 %v453, %v452
        %s455 = scalar_lea.vmem %s341, 8
        %v456 = vld [vmem:[%s455] sm:$0xf]
        %v457 = vld [vmem:[%s455 + $0x4] sm:$0xf]
        %v460 = vunpack.c.l.b16 %v456
        %v461 = vunpack.c.l.b16 %v457
        %v462 = vpack.c.b16 %v461, %v460
        %v464 = vsel %vm384, %v462, 0
        %466 = vmatpush.bf16.msra.mxu0 0
        %467 = vmatpush.bf16.msra.mxu0 0
        %468 = vmatpush.bf16.msra.mxu0 0
        %469 = vmatpush.bf16.msra.mxu0 0
        %470 = vmatpush.bf16.msra.mxu0 0
        %471 = vmatpush.bf16.msra.mxu0 0
        %472 = vmatpush.bf16.msra.mxu0 0
        %473 = vmatpush.bf16.msra.mxu0 %v454
        %474 = vmatmul.bf16.gmra.mxu0 %v464
        %v475 = vpop.f32.mrf.mxu0
        %v476 = vadd.f32 0.0, %v475
        %v477 = vpop.f32.mrf.mxu0
        %v478 = vadd.f32 0.0, %v477
        %479 = vdwg.mxu0
        %s480 = scalar_lea.vmem %s351, 16
        %v481 = vld [vmem:[%s480] sm:$0xff]
        %v482 = vld [vmem:[%s480 + $0x8] sm:$0xff]
        %484 = vset.pattern.permute.xlu0 0
        %485 = vperm.xlu0 %484, %v481
        %v486 = vpop.permute.xlu0 %485
        %489 = vset.pattern.permute.xlu0 0
        %490 = vperm.xlu0 %489, %v482
        %v491 = vpop.permute.xlu0 %490
        %v493 = vmul.f32 %v476, %v486
        %v494 = vmul.f32 %v478, %v491
        %v495 = vpack.c.bf16 %v494, %v493
        %s496 = scalar_lea.vmem %s289, 64 [#allocation4]
        %v497 = vld [vmem:[%s496] sm:$0xf]
        %v498 = vld [vmem:[%s496 + $0x4] sm:$0xf]
        %v499 = vld [vmem:[%s496 + $0x8] sm:$0xf]
        %v500 = vld [vmem:[%s496 + $0xc] sm:$0xf]
        %v501 = vld [vmem:[%s496 + $0x10] sm:$0xf]
        %v502 = vld [vmem:[%s496 + $0x14] sm:$0xf]
        %v503 = vld [vmem:[%s496 + $0x18] sm:$0xf]
        %v504 = vld [vmem:[%s496 + $0x1c] sm:$0xf]
        %v505 = vld [vmem:[%s496 + $0x20] sm:$0xf]
        %v506 = vld [vmem:[%s496 + $0x24] sm:$0xf]
        %v507 = vld [vmem:[%s496 + $0x28] sm:$0xf]
        %v508 = vld [vmem:[%s496 + $0x2c] sm:$0xf]
        %v509 = vld [vmem:[%s496 + $0x30] sm:$0xf]
        %v510 = vld [vmem:[%s496 + $0x34] sm:$0xf]
        %v511 = vld [vmem:[%s496 + $0x38] sm:$0xf]
        %v512 = vld [vmem:[%s496 + $0x3c] sm:$0xf]
        %v529 = vunpack.c.l.b16 %v497
        %v530 = vunpack.c.l.b16 %v498
        %v531 = vunpack.c.l.b16 %v499
        %v532 = vunpack.c.l.b16 %v500
        %v533 = vunpack.c.l.b16 %v501
        %v534 = vunpack.c.l.b16 %v502
        %v535 = vunpack.c.l.b16 %v503
        %v536 = vunpack.c.l.b16 %v504
        %v537 = vunpack.c.l.b16 %v505
        %v538 = vunpack.c.l.b16 %v506
        %v539 = vunpack.c.l.b16 %v507
        %v540 = vunpack.c.l.b16 %v508
        %v541 = vunpack.c.l.b16 %v509
        %v542 = vunpack.c.l.b16 %v510
        %v543 = vunpack.c.l.b16 %v511
        %v544 = vunpack.c.l.b16 %v512
        %v545 = vpack.c.b16 %v530, %v529
        %v546 = vpack.c.b16 %v532, %v531
        %v547 = vpack.c.b16 %v534, %v533
        %v548 = vpack.c.b16 %v536, %v535
        %v549 = vpack.c.b16 %v538, %v537
        %v550 = vpack.c.b16 %v540, %v539
        %v551 = vpack.c.b16 %v542, %v541
        %v552 = vpack.c.b16 %v544, %v543
        %561 = vmatpush.bf16.msra.mxu0 %v552
        %562 = vmatpush.bf16.msra.mxu0 %v551
        %563 = vmatpush.bf16.msra.mxu0 %v550
        %564 = vmatpush.bf16.msra.mxu0 %v549
        %565 = vmatpush.bf16.msra.mxu0 %v548
        %566 = vmatpush.bf16.msra.mxu0 %v547
        %567 = vmatpush.bf16.msra.mxu0 %v546
        %568 = vmatpush.bf16.msra.mxu0 %v545
        %569 = vmatmul.bf16.gmra.mxu0 %v495
        %v570 = vpop.f32.mrf.mxu0
        %v571 = vadd.f32 0.0, %v570
        %v572 = vpop.f32.mrf.mxu0
        %v573 = vadd.f32 0.0, %v572
        %574 = vdwg.mxu0
        %v591 = vunpack.c.l.b16 %v417
        %v592 = vunpack.c.l.b16 %v418
        %v593 = vunpack.c.l.b16 %v419
        %v594 = vunpack.c.l.b16 %v420
        %v595 = vunpack.c.l.b16 %v421
        %v596 = vunpack.c.l.b16 %v422
        %v597 = vunpack.c.l.b16 %v423
        %v598 = vunpack.c.l.b16 %v424
        %v599 = vunpack.c.l.b16 %v425
        %v600 = vunpack.c.l.b16 %v426
        %v601 = vunpack.c.l.b16 %v427
        %v602 = vunpack.c.l.b16 %v428
        %v603 = vunpack.c.l.b16 %v429
        %v604 = vunpack.c.l.b16 %v430
        %v605 = vunpack.c.l.b16 %v431
        %v606 = vunpack.c.l.b16 %v432
        %v607 = vpack.c.b16 %v592, %v591
        %v608 = vpack.c.b16 %v594, %v593
        %v609 = vpack.c.b16 %v596, %v595
        %v610 = vpack.c.b16 %v598, %v597
        %v611 = vpack.c.b16 %v600, %v599
        %v612 = vpack.c.b16 %v602, %v601
        %v613 = vpack.c.b16 %v604, %v603
        %v614 = vpack.c.b16 %v606, %v605
        %623 = vmatpush.bf16.msra.mxu0 %v614
        %624 = vmatpush.bf16.msra.mxu0 %v613
        %625 = vmatpush.bf16.msra.mxu0 %v612
        %626 = vmatpush.bf16.msra.mxu0 %v611
        %627 = vmatpush.bf16.msra.mxu0 %v610
        %628 = vmatpush.bf16.msra.mxu0 %v609
        %629 = vmatpush.bf16.msra.mxu0 %v608
        %630 = vmatpush.bf16.msra.mxu0 %v607
        %631 = vmatmul.bf16.gmra.mxu0 %v416
        %v632 = vpop.f32.mrf.mxu0
        %v633 = vadd.f32 %v571, %v632
        %v634 = vpop.f32.mrf.mxu0
        %v635 = vadd.f32 %v573, %v634
        %636 = vdwg.mxu0
        %v637 = vld [vmem:[%s354] sm:$0x1]
        %v639 = vperm.slane %v637, 0
        %v641 = vadd.f32 %v633, %v639
        %v642 = vadd.f32 %v635, %v639
        %v643 = vmax.f32 %v641, 0.0
        %v644 = vmax.f32 %v642, 0.0
        %645 = vst [vmem:[%s336] sm:$0xff] %v643
        %646 = vst [vmem:[%s336 + $0x8] sm:$0xff] %v644
        %s647 = sand.u32 %s191, 1
        %s648 = scalar_lea.sflag [#allocation6], %s647
        %s649 = sand.u32 %s191, 1
        %s650 = smul.addr %s649, 16
        %s651 = scalar_lea.vmem [#allocation7], %s650
        // Predicated region
        $region49: #{tpu_custom_call.1} parent=43 // pred_check
          %p652 = pneg %p201
        $region50: #{tpu_custom_call.1} parent=43 // pred_check_branch
          %654 = sbr.rel (%p652) target = $region52
        $region51: #{tpu_custom_call.1} parent=43 // pred_region
          %656 = vsyncadd %s648, 0
          %s657 = smul.addr %s32, 2
          %s658 = smul.addr %s657, 8
          %s659 = scalar_lea.hbm %s7, %s658
          %s660 = sshll.u32 %s651, 4
          %s661 = int_to_ptr.vmem [resolvable:$true] %s660
          %s662 = sshll.u32 %s659, 4
          %s663 = int_to_ptr.hbm [resolvable:$true] %s662
          %668 = dma.vmem_to_hbm [thread:$0]  %s661, 256, %s663, %s648, 128, 128, 8
        $region52: #{tpu_custom_call.1} parent=43 // pred_fallthru
          _
      $region44: #{tpu_custom_call.1} parent=5 // pred_fallthru
        _
      %p669 = scmp.le.s32.totalorder 2, %s27
      // Predicated region
      $region53: #{tpu_custom_call.1} parent=5 // pred_check
        %p670 = pneg %p669
      $region54: #{tpu_custom_call.1} parent=5 // pred_check_branch
        %672 = sbr.rel (%p670) target = $region56
      $region55: #{tpu_custom_call.1} parent=5 // pred_region
        %s673 = ssub.s32 %s27, 2
        // Predicated region
        $region57: #{tpu_custom_call.1} parent=55 // pred_check
          %p674 = pneg %p207
        $region58: #{tpu_custom_call.1} parent=55 // pred_check_branch
          %676 = sbr.rel (%p674) target = $region60
        $region59: #{tpu_custom_call.1} parent=55 // pred_region
          %s677 = sand.u32 %s192, 1
          %s678 = scalar_lea.sflag [#allocation6], %s677
          %s679 = sand.u32 %s192, 1
          %s680 = smul.addr %s679, 16
          %s681 = scalar_lea.vmem [#allocation7], %s680
          %683 = dma.done %s678, 256
        $region60: #{tpu_custom_call.1} parent=55 // pred_fallthru
          _
      $region56: #{tpu_custom_call.1} parent=5 // pred_fallthru
        _
    $region6: #{tpu_custom_call.1} parent=1 // loop_footer
      %s31 = sadd.s32 1, %s27
    $region7: #{tpu_custom_call.1} parent=1 // loop_footer_branch
      %26 = sbr.rel target = $region3
    $region8: #{tpu_custom_call.1} parent=1 // loop_exit
      _
    %684 = vsyncpa [#allocation5], 1
    %s685 = scalar_lea.sflag [#allocation5], 1
    %686 = vsyncpa %s685, 1
    %687 = vsyncpa [#allocation6], 1
    %s688 = scalar_lea.sflag [#allocation6], 1
    %689 = vsyncpa %s688, 1

</llo_original>
